<compile_context>
chip_gen: v5e
topology: v5e:2x2
jax: 0.10.0
libtpu: 0.0.40
codegen_flags: <defaults>
</compile_context>

<pallas_src>
import jax
import jax.numpy as jnp
from jax import lax
from jax.experimental import pallas as pl
from jax.experimental.pallas import tpu as pltpu

# ---------------------------------------------------------------------------
# Problem sizes (small, TPU-friendly: vocab on the 128-lane axis)
# ---------------------------------------------------------------------------
B = 2      # batch
S = 8      # sequence length
E = 32     # embedding dim
H = 32     # hidden dim
V = 128    # vocab size

OUT_ROWS = 8   # sublane-aligned partial-result slab written per grid step


# ---------------------------------------------------------------------------
# Pallas kernel: fused embedding + LM body + shifted masked cross-entropy
# ---------------------------------------------------------------------------
def promptlm_loss_kernel(ids_ref, lmask_ref, w1f_ref, w2_ref, b2_ref, out_ref):
    """One grid step = one sequence of S tokens.

    ids_ref   : (S, 1) int32    token ids of this sequence
    lmask_ref : (S, 1) int32    loss_ids of this sequence
    w1f_ref   : (V, H) bf16     emb @ w1 + b1  (embedding + first layer + bias folded)
    w2_ref    : (H, V) bf16     LM head weight
    b2_ref    : (1, V) f32      LM head bias
    out_ref   : (8, V) f32      lane-dense partials: [0,0]=loss_sum, [0,1]=valid_count
    """
    s = ids_ref.shape[0]
    v = w1f_ref.shape[0]

    ids = ids_ref[...]        # (s, 1) int32
    lmask = lmask_ref[...]    # (s, 1) int32

    # Token one-hot, shared by the embedding matmul and the label gather.
    vocab_iota = lax.broadcasted_iota(jnp.int32, (s, v), 1)
    onehot = (vocab_iota == ids).astype(jnp.float32)                    # (s, v)

    # ---- synthetic LM body -------------------------------------------------
    # Embedding lookup fused as a one-hot MXU matmul; b1 is pre-folded into w1f,
    # so onehot @ w1f == (emb @ w1 + b1)[ids] exactly (one nonzero term per row).
    h = jnp.tanh(jnp.dot(onehot.astype(jnp.bfloat16), w1f_ref[...],
                         preferred_element_type=jnp.float32))           # (s, H) f32
    logits = jnp.dot(h.astype(jnp.bfloat16), w2_ref[...],
                     preferred_element_type=jnp.float32) + b2_ref[...]  # (s, v) f32

    # ---- shift_logits_and_labels fused in-kernel ----------------------------
    # label[t] = ids[t+1] where lmask[t+1] > 0, else ignore (-100 semantics).
    # Realised by shifting the loss-masked one-hot rows up by one using a tiny
    # shift-matrix matmul (exact 0/1 result, no roll / gather needed).
    t_iota = lax.broadcasted_iota(jnp.int32, (s, 1), 0)
    valid_next = jnp.where((lmask > 0) & (t_iota > 0), 1.0, 0.0)        # (s, 1)
    onehot_next = (onehot * valid_next).astype(jnp.bfloat16)            # (s, v)
    r_iota = lax.broadcasted_iota(jnp.int32, (s, s), 0)
    c_iota = lax.broadcasted_iota(jnp.int32, (s, s), 1)
    shift_mat = (c_iota == r_iota + 1).astype(jnp.bfloat16)             # (s, s)
    shifted_onehot = jnp.dot(shift_mat, onehot_next,
                             preferred_element_type=jnp.float32)        # (s, v) 0/1

    # ---- masked cross-entropy (stable; shares z = logits - m, the m cancels) --
    m = jnp.max(logits, axis=1, keepdims=True)
    z = logits - m
    lse_rel = jnp.log(jnp.sum(jnp.exp(z), axis=1, keepdims=True))       # lse - m
    gathered = jnp.sum(shifted_onehot * z, axis=1, keepdims=True)       # (lbl_logit - m)*valid
    valid_row = jnp.sum(shifted_onehot, axis=1, keepdims=True)          # 1.0 on loss rows

    loss_sum = jnp.sum(valid_row * lse_rel - gathered)
    valid_cnt = jnp.sum(valid_row)

    # Lane-dense partial-result slab: full-vreg, unmasked stores.
    rows, lanes = out_ref.shape
    row_i = lax.broadcasted_iota(jnp.int32, (rows, lanes), 0)
    lane_i = lax.broadcasted_iota(jnp.int32, (rows, lanes), 1)
    out_ref[...] = jnp.where((row_i == 0) & (lane_i == 0), loss_sum,
                             jnp.where((row_i == 0) & (lane_i == 1), valid_cnt, 0.0))


# ---------------------------------------------------------------------------
# Wrappers
# ---------------------------------------------------------------------------
def fold_params(params):
    """One-time parameter folding (outside the hot path):
    embedding ∘ (· @ w1 + b1) collapses into a single (V, H) lookup table,
    and the MXU operands are pre-cast to bf16."""
    emb, w1, b1, w2, b2 = params
    w1f = (emb @ w1 + b1).astype(jnp.bfloat16)         # (V, H)
    return w1f, w2.astype(jnp.bfloat16), b2.astype(jnp.float32)


@jax.jit
def promptlm_forward(folded_params, input_ids, loss_ids):
    """Mirrors PromptLM._forward: returns the scalar mean CE loss."""
    w1f, w2b, b2 = folded_params
    bq, sq = input_ids.shape
    v, hh = w1f.shape

    ids_col = input_ids.reshape(-1, 1).astype(jnp.int32)     # (B*S, 1)
    lmask_col = loss_ids.reshape(-1, 1).astype(jnp.int32)    # (B*S, 1)

    cost = pl.CostEstimate(
        flops=2 * bq * sq * (v * hh + hh * v) + 2 * bq * sq * sq * v,
        transcendentals=bq * sq * (v + hh + 1),               # exp + tanh + log
        bytes_accessed=(ids_col.size + lmask_col.size) * 4
        + (w1f.size + w2b.size) * 2 + b2.size * 4 + bq * OUT_ROWS * v * 4,
    )

    partials = pl.pallas_call(
        promptlm_loss_kernel,
        out_shape=jax.ShapeDtypeStruct((bq * OUT_ROWS, v), jnp.float32),
        grid_spec=pltpu.PrefetchScalarGridSpec(
            num_scalar_prefetch=0,
            grid=(bq,),                                        # one sequence per step
            in_specs=[
                pl.BlockSpec((sq, 1), lambda i: (i, 0)),       # ids
                pl.BlockSpec((sq, 1), lambda i: (i, 0)),       # loss mask
                pl.BlockSpec((v, hh), lambda i: (0, 0)),       # folded emb@w1+b1
                pl.BlockSpec((hh, v), lambda i: (0, 0)),       # w2
                pl.BlockSpec((1, v), lambda i: (0, 0)),        # b2
            ],
            out_specs=pl.BlockSpec((OUT_ROWS, v), lambda i: (i, 0)),
        ),
        compiler_params=pltpu.CompilerParams(
            dimension_semantics=("parallel",)),                # megacore on v7x
        cost_estimate=cost,
    )(ids_col, lmask_col, w1f, w2b, b2)

    # Tiny final reduction outside: per-tile (loss_sum, valid_count) -> mean loss.
    loss_sum = jnp.sum(partials[:, 0])
    valid_cnt = jnp.sum(partials[:, 1])
    return loss_sum / jnp.maximum(valid_cnt, 1.0)


def promptlm_forward_ref(params, input_ids, loss_ids):
    """Pure-JAX reference: same synthetic LM (bf16 matmul operands, f32 accumulate)
    followed by the module's shift_logits_and_labels + mean CE with ignore_index."""
    emb, w1, b1, w2, b2 = params
    bq, sq = input_ids.shape
    v = emb.shape[0]

    w1f = (emb @ w1 + b1).astype(jnp.bfloat16)                 # same folding
    ids_flat = input_ids.reshape(-1)
    h = jnp.tanh(jnp.take(w1f, ids_flat, axis=0).astype(jnp.float32))
    logits = (jnp.dot(h.astype(jnp.bfloat16), w2.astype(jnp.bfloat16),
                      preferred_element_type=jnp.float32) + b2).reshape(bq, sq, v)

    shift_logits = logits[:, :-1, :].reshape(-1, v)
    labels = jnp.where(loss_ids[:, 1:] > 0, input_ids[:, 1:], -100).reshape(-1)

    m = jnp.max(shift_logits, axis=-1, keepdims=True)
    lse = (m + jnp.log(jnp.sum(jnp.exp(shift_logits - m), axis=-1, keepdims=True)))[:, 0]
    lab_logit = jnp.take_along_axis(
        shift_logits, jnp.maximum(labels, 0)[:, None], axis=-1)[:, 0]
    valid = (labels >= 0).astype(jnp.float32)
    return jnp.sum((lse - lab_logit) * valid) / jnp.maximum(jnp.sum(valid), 1.0)


# TODO(synk): generation utilities (generate / post_processing / tokenizer decode)
# and the HF past_key_value plumbing have no Pallas equivalent and are not ported.

if __name__ == "__main__":
    key = jax.random.PRNGKey(0)
    k_emb, k_w1, k_w2, k_ids, _ = jax.random.split(key, 5)

    # deterministic synthetic parameters
    emb = 0.02 * jax.random.normal(k_emb, (V, E), jnp.float32)
    w1 = 0.1 * jax.random.normal(k_w1, (E, H), jnp.float32)
    b1 = jnp.zeros((1, H), jnp.float32)
    w2 = 0.1 * jax.random.normal(k_w2, (H, V), jnp.float32)
    b2 = jnp.zeros((1, V), jnp.float32)
    params = (emb, w1, b1, w2, b2)

    # deterministic synthetic batch (InputFeatures: input_ids + loss_ids)
    input_ids = jax.random.randint(k_ids, (B, S), 0, V, dtype=jnp.int32)
    # mark the second half of each sequence as loss positions
    loss_ids = (jnp.arange(S)[None, :] >= S // 2).astype(jnp.int32) * jnp.ones(
        (B, 1), jnp.int32
    )

    folded = fold_params(params)   # one-time parameter folding (outside hot path)

    loss = jax.block_until_ready(promptlm_forward(folded, input_ids, loss_ids))
    loss_ref = jax.block_until_ready(promptlm_forward_ref(params, input_ids, loss_ids))

    assert jnp.isfinite(loss), "loss is not finite"
    assert jnp.allclose(loss, loss_ref, rtol=1e-3, atol=1e-3), (loss, loss_ref)
    print("KERNEL_OK")
</pallas_src>

<mosaic_0001>
module attributes {stable_mosaic.version = 11 : i64} {
  func.func @promptlm_loss_kernel(%arg0: i32, %arg1: memref<8x1xi32, #tpu.memory_space<vmem>>, %arg2: memref<8x1xi32, #tpu.memory_space<vmem>>, %arg3: memref<128x32xbf16, #tpu.memory_space<vmem>>, %arg4: memref<32x128xbf16, #tpu.memory_space<vmem>>, %arg5: memref<1x128xf32, #tpu.memory_space<vmem>>, %arg6: memref<8x128xf32, #tpu.memory_space<vmem>>) attributes {dimension_semantics = [#tpu.dimension_semantics<parallel>], iteration_bounds = array<i64: 2>, scalar_prefetch = 0 : i64, scratch_operands = 0 : i64, tpu.core_type = #tpu.core_type<tc>, window_params = [{transform_indices = @transform_0, window_bounds = array<i64: 8, 1>}, {transform_indices = @transform_1, window_bounds = array<i64: 8, 1>}, {pipeline_mode = #tpu.pipeline_mode<synchronous>, transform_indices = @transform_2, window_bounds = array<i64: 128, 32>}, {pipeline_mode = #tpu.pipeline_mode<synchronous>, transform_indices = @transform_3, window_bounds = array<i64: 32, 128>}, {pipeline_mode = #tpu.pipeline_mode<synchronous>, transform_indices = @transform_4, window_bounds = array<i64: 1, 128>}, {transform_indices = @transform_5, window_bounds = array<i64: 8, 128>}]} {
    %c0 = arith.constant 0 : index
    %c0_0 = arith.constant 0 : index
    %0 = vector.load %arg1[%c0, %c0_0] : memref<8x1xi32, #tpu.memory_space<vmem>>, vector<8x1xi32>
    %c0_1 = arith.constant 0 : index
    %c0_2 = arith.constant 0 : index
    %1 = vector.load %arg2[%c0_1, %c0_2] : memref<8x1xi32, #tpu.memory_space<vmem>>, vector<8x1xi32>
    %2 = tpu.iota {dimensions = array<i32: 1>} : vector<8x128xi32>
    %3 = vector.broadcast %0 : vector<8x1xi32> to vector<8x128xi32>
    %4 = arith.cmpi eq, %2, %3 : vector<8x128xi32>
    %5 = arith.extui %4 : vector<8x128xi1> to vector<8x128xi32>
    %6 = arith.sitofp %5 : vector<8x128xi32> to vector<8x128xf32>
    %7 = arith.truncf %6 : vector<8x128xf32> to vector<8x128xbf16>
    %c0_3 = arith.constant 0 : index
    %c0_4 = arith.constant 0 : index
    %8 = vector.load %arg3[%c0_3, %c0_4] : memref<128x32xbf16, #tpu.memory_space<vmem>>, vector<128x32xbf16>
    %cst = arith.constant dense<0.000000e+00> : vector<8x32xf32>
    %9 = tpu.matmul %7, %8, %cst {dimension_numbers = #tpu.dot_dimension_numbers<[1], [0], [0], [1], [0, 0, 1, 1], [], []>} : vector<8x128xbf16>, vector<128x32xbf16>, vector<8x32xf32> -> vector<8x32xf32>
    %10 = math.tanh %9 : vector<8x32xf32>
    %11 = arith.truncf %10 : vector<8x32xf32> to vector<8x32xbf16>
    %c0_5 = arith.constant 0 : index
    %c0_6 = arith.constant 0 : index
    %12 = vector.load %arg4[%c0_5, %c0_6] : memref<32x128xbf16, #tpu.memory_space<vmem>>, vector<32x128xbf16>
    %cst_7 = arith.constant dense<0.000000e+00> : vector<8x128xf32>
    %13 = tpu.matmul %11, %12, %cst_7 {dimension_numbers = #tpu.dot_dimension_numbers<[1], [0], [0], [1], [0, 0, 1, 1], [], []>} : vector<8x32xbf16>, vector<32x128xbf16>, vector<8x128xf32> -> vector<8x128xf32>
    %c0_8 = arith.constant 0 : index
    %c0_9 = arith.constant 0 : index
    %14 = vector.load %arg5[%c0_8, %c0_9] : memref<1x128xf32, #tpu.memory_space<vmem>>, vector<1x128xf32>
    %15 = vector.broadcast %14 : vector<1x128xf32> to vector<8x128xf32>
    %16 = arith.addf %13, %15 : vector<8x128xf32>
    %17 = tpu.iota {dimensions = array<i32: 0>} : vector<8x1xi32>
    %c0_i32 = arith.constant 0 : i32
    %18 = vector.broadcast %c0_i32 : i32 to vector<8x1xi32>
    %19 = arith.cmpi sgt, %1, %18 : vector<8x1xi32>
    %c0_i32_10 = arith.constant 0 : i32
    %20 = vector.broadcast %c0_i32_10 : i32 to vector<8x1xi32>
    %21 = arith.cmpi sgt, %17, %20 : vector<8x1xi32>
    %22 = arith.andi %19, %21 : vector<8x1xi1>
    %cst_11 = arith.constant 1.000000e+00 : f32
    %cst_12 = arith.constant 0.000000e+00 : f32
    %23 = vector.broadcast %cst_11 : f32 to vector<8x1xf32>
    %24 = vector.broadcast %cst_12 : f32 to vector<8x1xf32>
    %25 = arith.select %22, %23, %24 : vector<8x1xi1>, vector<8x1xf32>
    %26 = vector.broadcast %25 : vector<8x1xf32> to vector<8x128xf32>
    %27 = arith.mulf %6, %26 : vector<8x128xf32>
    %28 = arith.truncf %27 : vector<8x128xf32> to vector<8x128xbf16>
    %29 = tpu.iota {dimensions = array<i32: 0>} : vector<8x8xi32>
    %30 = tpu.iota {dimensions = array<i32: 1>} : vector<8x8xi32>
    %c1_i32 = arith.constant 1 : i32
    %31 = vector.broadcast %c1_i32 : i32 to vector<8x8xi32>
    %32 = arith.addi %29, %31 : vector<8x8xi32>
    %33 = arith.cmpi eq, %30, %32 : vector<8x8xi32>
    %34 = arith.extui %33 : vector<8x8xi1> to vector<8x8xi32>
    %35 = arith.sitofp %34 : vector<8x8xi32> to vector<8x8xf32>
    %36 = arith.truncf %35 : vector<8x8xf32> to vector<8x8xbf16>
    %cst_13 = arith.constant dense<0.000000e+00> : vector<8x128xf32>
    %37 = tpu.matmul %36, %28, %cst_13 {dimension_numbers = #tpu.dot_dimension_numbers<[1], [0], [0], [1], [0, 0, 1, 1], [], []>} : vector<8x8xbf16>, vector<8x128xbf16>, vector<8x128xf32> -> vector<8x128xf32>
    %cst_14 = arith.constant dense<0xFF800000> : vector<8xf32>
    %38 = vector.multi_reduction <maximumf>, %16, %cst_14 [1] : vector<8x128xf32> to vector<8xf32>
    %39 = vector.shape_cast %38 : vector<8xf32> to vector<8x1xf32>
    %40 = vector.broadcast %39 : vector<8x1xf32> to vector<8x128xf32>
    %41 = arith.subf %16, %40 : vector<8x128xf32>
    %42 = math.exp %41 : vector<8x128xf32>
    %cst_15 = arith.constant dense<0.000000e+00> : vector<8xf32>
    %43 = vector.multi_reduction <add>, %42, %cst_15 [1] : vector<8x128xf32> to vector<8xf32>
    %44 = vector.shape_cast %43 : vector<8xf32> to vector<8x1xf32>
    %45 = math.log %44 : vector<8x1xf32>
    %46 = arith.mulf %37, %41 : vector<8x128xf32>
    %cst_16 = arith.constant dense<0.000000e+00> : vector<8xf32>
    %47 = vector.multi_reduction <add>, %46, %cst_16 [1] : vector<8x128xf32> to vector<8xf32>
    %48 = vector.shape_cast %47 : vector<8xf32> to vector<8x1xf32>
    %cst_17 = arith.constant dense<0.000000e+00> : vector<8xf32>
    %49 = vector.multi_reduction <add>, %37, %cst_17 [1] : vector<8x128xf32> to vector<8xf32>
    %50 = vector.shape_cast %49 : vector<8xf32> to vector<8x1xf32>
    %51 = arith.mulf %50, %45 : vector<8x1xf32>
    %52 = arith.subf %51, %48 : vector<8x1xf32>
    %53 = vector.shape_cast %52 : vector<8x1xf32> to vector<1x8x1xf32>
    %cst_18 = arith.constant dense<0.000000e+00> : vector<1xf32>
    %54 = vector.multi_reduction <add>, %53, %cst_18 [1, 2] : vector<1x8x1xf32> to vector<1xf32>
    %55 = vector.shape_cast %54 : vector<1xf32> to vector<1x1x1xf32>
    %56 = vector.extract %55[0, 0, 0] : f32 from vector<1x1x1xf32>
    %57 = vector.shape_cast %50 : vector<8x1xf32> to vector<1x8x1xf32>
    %cst_19 = arith.constant dense<0.000000e+00> : vector<1xf32>
    %58 = vector.multi_reduction <add>, %57, %cst_19 [1, 2] : vector<1x8x1xf32> to vector<1xf32>
    %59 = vector.shape_cast %58 : vector<1xf32> to vector<1x1x1xf32>
    %60 = vector.extract %59[0, 0, 0] : f32 from vector<1x1x1xf32>
    %61 = tpu.iota {dimensions = array<i32: 0>} : vector<8x128xi32>
    %62 = tpu.iota {dimensions = array<i32: 1>} : vector<8x128xi32>
    %c0_i32_20 = arith.constant 0 : i32
    %63 = vector.broadcast %c0_i32_20 : i32 to vector<8x128xi32>
    %64 = arith.cmpi eq, %61, %63 : vector<8x128xi32>
    %c0_i32_21 = arith.constant 0 : i32
    %65 = vector.broadcast %c0_i32_21 : i32 to vector<8x128xi32>
    %66 = arith.cmpi eq, %62, %65 : vector<8x128xi32>
    %67 = arith.andi %64, %66 : vector<8x128xi1>
    %c0_i32_22 = arith.constant 0 : i32
    %68 = vector.broadcast %c0_i32_22 : i32 to vector<8x128xi32>
    %69 = arith.cmpi eq, %61, %68 : vector<8x128xi32>
    %c1_i32_23 = arith.constant 1 : i32
    %70 = vector.broadcast %c1_i32_23 : i32 to vector<8x128xi32>
    %71 = arith.cmpi eq, %62, %70 : vector<8x128xi32>
    %72 = arith.andi %69, %71 : vector<8x128xi1>
    %cst_24 = arith.constant 0.000000e+00 : f32
    %73 = vector.broadcast %60 : f32 to vector<8x128xf32>
    %74 = vector.broadcast %cst_24 : f32 to vector<8x128xf32>
    %75 = arith.select %72, %73, %74 : vector<8x128xi1>, vector<8x128xf32>
    %76 = vector.broadcast %56 : f32 to vector<8x128xf32>
    %77 = arith.select %67, %76, %75 : vector<8x128xi1>, vector<8x128xf32>
    %c0_25 = arith.constant 0 : index
    %c0_26 = arith.constant 0 : index
    %78 = vector.load %arg6[%c0_25, %c0_26] : memref<8x128xf32, #tpu.memory_space<vmem>>, vector<8x128xf32>
    tpu.vector_store %arg6[%c0_25, %c0_26], %77 {strides = array<i32>} : memref<8x128xf32, #tpu.memory_space<vmem>>, vector<8x128xf32>,
    return
  }
  func.func @transform_0(%arg0: i32) -> (i32, i32) {
    %c0_i32 = arith.constant 0 : i32
    %c0_i32_0 = arith.constant 0 : i32
    return %arg0, %c0_i32 : i32, i32
  }
  func.func @transform_1(%arg0: i32) -> (i32, i32) {
    %c0_i32 = arith.constant 0 : i32
    %c0_i32_0 = arith.constant 0 : i32
    return %arg0, %c0_i32 : i32, i32
  }
  func.func @transform_2(%arg0: i32) -> (i32, i32) {
    %c0_i32 = arith.constant 0 : i32
    %c0_i32_0 = arith.constant 0 : i32
    %c0_i32_1 = arith.constant 0 : i32
    return %c0_i32, %c0_i32_0 : i32, i32
  }
  func.func @transform_3(%arg0: i32) -> (i32, i32) {
    %c0_i32 = arith.constant 0 : i32
    %c0_i32_0 = arith.constant 0 : i32
    %c0_i32_1 = arith.constant 0 : i32
    return %c0_i32, %c0_i32_0 : i32, i32
  }
  func.func @transform_4(%arg0: i32) -> (i32, i32) {
    %c0_i32 = arith.constant 0 : i32
    %c0_i32_0 = arith.constant 0 : i32
    %c0_i32_1 = arith.constant 0 : i32
    return %c0_i32, %c0_i32_0 : i32, i32
  }
  func.func @transform_5(%arg0: i32) -> (i32, i32) {
    %c0_i32 = arith.constant 0 : i32
    %c0_i32_0 = arith.constant 0 : i32
    return %arg0, %c0_i32 : i32, i32
  }
}

</mosaic_0001>

<llo_original>
// kernel: promptlm_forward.1
$region0: #{promptlm_forward.1}
  #allocation0 [shape = 'u32[]', space=smem, size = 0x4, offset = 0x4, fixed_abs, tag = 'smem constant byte address 0x4 - core index']
  #allocation1 [shape = 'u32[72,128]{1,0:T(1,128)}', space=vmem, size = 0x9000, scoped, tag = 'internal scratch']
  %s0 = inlined_call_operand.vmem [shape: s32[16,1], index: 0, kind: input, shape index: {}]
  %s1 = inlined_call_operand.vmem [shape: s32[16,1], index: 1, kind: input, shape index: {}]
  %s2 = inlined_call_operand.vmem [shape: bf16[128,32], index: 2, kind: input, shape index: {}]
  %s3 = inlined_call_operand.vmem [shape: bf16[32,128], index: 3, kind: input, shape index: {}]
  %s4 = inlined_call_operand.vmem [shape: f32[1,128], index: 4, kind: input, shape index: {}]
  %s5 = inlined_call_operand.vmem [shape: f32[16,128], index: 5, kind: output, shape index: {}]
  %s6 = sld [smem:[#allocation0]]
  $region53: #{promptlm_forward.1} parent=0
    _
  %s8 = ssub.s32 1, %s6
  %s9 = scalar_select 0, %s8, %s6
  loop: start=0, step=1, limit=4
  $region2: #{promptlm_forward.1} parent=0 // loop_pre_header
    _
  $region3: #{promptlm_forward.1} parent=0 // loop_header
    %s11 = sphi 0, %s15
    %p12 = scmp.ge.s32.totalorder %s11, 4
    %s21 = sphi 0, %s23
    %s24 = sphi 0, %s21
    %s25 = sphi 0, %s24
    %s41 = sphi 0, %s25
    %s47 = sphi 0, %s49
    %s50 = sphi 0, %s47
    %s51 = sphi 0, %s50
    %s67 = sphi 0, %s51
    %s71 = sphi 0, %s71
    %s73 = sphi 0, %s71
    %s74 = sphi 0, %s73
    %s88 = sphi 0, %s74
    %s92 = sphi 0, %s92
    %s94 = sphi 0, %s92
    %s95 = sphi 0, %s94
    %s109 = sphi 0, %s95
    %s113 = sphi 0, %s113
    %s115 = sphi 0, %s113
    %s116 = sphi 0, %s115
    %s130 = sphi 0, %s116
    %s136 = sphi 0, %s138
    %s139 = sphi 0, %s136
    %s140 = sphi 0, %s139
    %s156 = sphi 0, %s140
  $region4: #{promptlm_forward.1} parent=0 // loop_header_branch
    %14 = sbr.rel (%p12) target = $region8
  $region5: #{promptlm_forward.1} parent=0 // loop_body
    %s16 = ssub.s32 %s11, 1
    %s17 = ssub.s32 %s11, 2
    %s18 = sadd.s32 %s11, 1
    %s19 = ssub.s32 %s11, %s18
    %p20 = scmp.eq.s32.totalorder %s19, 0
    %s22 = sadd.s32 %s21, 1
    %s23 = scalar_select %p20, %s21, %s22
    %p26 = pneg %p20
    %p27 = scmp.eq.s32.totalorder %s11, 1
    %p28 = por %p26, %p27
    %p29 = scmp.ne.s32.totalorder %s21, %s24
    %p30 = scmp.eq.s32.totalorder %s11, 0
    %p31 = por %p29, %p30
    %p32 = scmp.ne.s32.totalorder %s21, %s24
    %p33 = scmp.eq.s32.totalorder %s16, 1
    %p34 = por %p32, %p33
    %p35 = scmp.ne.s32.totalorder %s24, %s25
    %p36 = scmp.eq.s32.totalorder %s16, 0
    %p37 = por %p35, %p36
    %p38 = scmp.ne.s32.totalorder %s24, %s25
    %p39 = scmp.eq.s32.totalorder %s17, 1
    %p40 = por %p38, %p39
    %p42 = scmp.ne.s32.totalorder %s25, %s41
    %p43 = scmp.eq.s32.totalorder %s17, 0
    %p44 = por %p42, %p43
    %s45 = ssub.s32 %s11, %s18
    %p46 = scmp.eq.s32.totalorder %s45, 0
    %s48 = sadd.s32 %s47, 1
    %s49 = scalar_select %p46, %s47, %s48
    %p52 = pneg %p46
    %p53 = scmp.eq.s32.totalorder %s11, 1
    %p54 = por %p52, %p53
    %p55 = scmp.ne.s32.totalorder %s47, %s50
    %p56 = scmp.eq.s32.totalorder %s11, 0
    %p57 = por %p55, %p56
    %p58 = scmp.ne.s32.totalorder %s47, %s50
    %p59 = scmp.eq.s32.totalorder %s16, 1
    %p60 = por %p58, %p59
    %p61 = scmp.ne.s32.totalorder %s50, %s51
    %p62 = scmp.eq.s32.totalorder %s16, 0
    %p63 = por %p61, %p62
    %p64 = scmp.ne.s32.totalorder %s50, %s51
    %p65 = scmp.eq.s32.totalorder %s17, 1
    %p66 = por %p64, %p65
    %p68 = scmp.ne.s32.totalorder %s51, %s67
    %p69 = scmp.eq.s32.totalorder %s17, 0
    %p70 = por %p68, %p69
    %s72 = sadd.s32 %s71, 1
    %p75 = scmp.eq.s32.totalorder %s11, 1
    %p76 = scmp.ne.s32.totalorder %s71, %s73
    %p77 = scmp.eq.s32.totalorder %s11, 0
    %p78 = por %p76, %p77
    %p79 = scmp.ne.s32.totalorder %s71, %s73
    %p80 = scmp.eq.s32.totalorder %s16, 1
    %p81 = por %p79, %p80
    %p82 = scmp.ne.s32.totalorder %s73, %s74
    %p83 = scmp.eq.s32.totalorder %s16, 0
    %p84 = por %p82, %p83
    %p85 = scmp.ne.s32.totalorder %s73, %s74
    %p86 = scmp.eq.s32.totalorder %s17, 1
    %p87 = por %p85, %p86
    %p89 = scmp.ne.s32.totalorder %s74, %s88
    %p90 = scmp.eq.s32.totalorder %s17, 0
    %p91 = por %p89, %p90
    %s93 = sadd.s32 %s92, 1
    %p96 = scmp.eq.s32.totalorder %s11, 1
    %p97 = scmp.ne.s32.totalorder %s92, %s94
    %p98 = scmp.eq.s32.totalorder %s11, 0
    %p99 = por %p97, %p98
    %p100 = scmp.ne.s32.totalorder %s92, %s94
    %p101 = scmp.eq.s32.totalorder %s16, 1
    %p102 = por %p100, %p101
    %p103 = scmp.ne.s32.totalorder %s94, %s95
    %p104 = scmp.eq.s32.totalorder %s16, 0
    %p105 = por %p103, %p104
    %p106 = scmp.ne.s32.totalorder %s94, %s95
    %p107 = scmp.eq.s32.totalorder %s17, 1
    %p108 = por %p106, %p107
    %p110 = scmp.ne.s32.totalorder %s95, %s109
    %p111 = scmp.eq.s32.totalorder %s17, 0
    %p112 = por %p110, %p111
    %s114 = sadd.s32 %s113, 1
    %p117 = scmp.eq.s32.totalorder %s11, 1
    %p118 = scmp.ne.s32.totalorder %s113, %s115
    %p119 = scmp.eq.s32.totalorder %s11, 0
    %p120 = por %p118, %p119
    %p121 = scmp.ne.s32.totalorder %s113, %s115
    %p122 = scmp.eq.s32.totalorder %s16, 1
    %p123 = por %p121, %p122
    %p124 = scmp.ne.s32.totalorder %s115, %s116
    %p125 = scmp.eq.s32.totalorder %s16, 0
    %p126 = por %p124, %p125
    %p127 = scmp.ne.s32.totalorder %s115, %s116
    %p128 = scmp.eq.s32.totalorder %s17, 1
    %p129 = por %p127, %p128
    %p131 = scmp.ne.s32.totalorder %s116, %s130
    %p132 = scmp.eq.s32.totalorder %s17, 0
    %p133 = por %p131, %p132
    %s134 = ssub.s32 %s11, %s18
    %p135 = scmp.eq.s32.totalorder %s134, 0
    %s137 = sadd.s32 %s136, 1
    %s138 = scalar_select %p135, %s136, %s137
    %p141 = pneg %p135
    %p142 = scmp.eq.s32.totalorder %s11, 1
    %p143 = por %p141, %p142
    %p144 = scmp.ne.s32.totalorder %s136, %s139
    %p145 = scmp.eq.s32.totalorder %s11, 0
    %p146 = por %p144, %p145
    %p147 = scmp.ne.s32.totalorder %s136, %s139
    %p148 = scmp.eq.s32.totalorder %s16, 1
    %p149 = por %p147, %p148
    %p150 = scmp.ne.s32.totalorder %s139, %s140
    %p151 = scmp.eq.s32.totalorder %s16, 0
    %p152 = por %p150, %p151
    %p153 = scmp.ne.s32.totalorder %s139, %s140
    %p154 = scmp.eq.s32.totalorder %s17, 1
    %p155 = por %p153, %p154
    %p157 = scmp.ne.s32.totalorder %s140, %s156
    %p158 = scmp.eq.s32.totalorder %s17, 0
    %p159 = por %p157, %p158
    %p160 = scmp.le.s32.totalorder 1, %s11
    %p161 = scmp.lt.s32.totalorder %s11, 3
    %p162 = pnand %p160, %p161
    %p163 = pneg %p162
    // Predicated region
    $region9: #{promptlm_forward.1} parent=5 // pred_check
      _
    $region10: #{promptlm_forward.1} parent=5 // pred_check_branch
      %165 = sbr.rel (%p162) target = $region12
    $region11: #{promptlm_forward.1} parent=5 // pred_region
      %s166 = ssub.s32 %s11, 1
      // Predicated region
      $region13: #{promptlm_forward.1} parent=11 // pred_check
        %p167 = pneg %p84
      $region14: #{promptlm_forward.1} parent=11 // pred_check_branch
        %169 = sbr.rel (%p167) target = $region16
      $region15: #{promptlm_forward.1} parent=11 // pred_region
        _
      $region16: #{promptlm_forward.1} parent=11 // pred_fallthru
        _
      // Predicated region
      $region17: #{promptlm_forward.1} parent=11 // pred_check
        %p170 = pneg %p105
      $region18: #{promptlm_forward.1} parent=11 // pred_check_branch
        %172 = sbr.rel (%p170) target = $region20
      $region19: #{promptlm_forward.1} parent=11 // pred_region
        _
      $region20: #{promptlm_forward.1} parent=11 // pred_fallthru
        _
      // Predicated region
      $region21: #{promptlm_forward.1} parent=11 // pred_check
        %p173 = pneg %p126
      $region22: #{promptlm_forward.1} parent=11 // pred_check_branch
        %175 = sbr.rel (%p173) target = $region24
      $region23: #{promptlm_forward.1} parent=11 // pred_region
        _
      $region24: #{promptlm_forward.1} parent=11 // pred_fallthru
        _
    $region12: #{promptlm_forward.1} parent=5 // pred_fallthru
      _
    %p176 = scmp.lt.s32.totalorder %s11, 2
    // Predicated region
    $region25: #{promptlm_forward.1} parent=5 // pred_check
      %p177 = pneg %p176
    $region26: #{promptlm_forward.1} parent=5 // pred_check_branch
      %179 = sbr.rel (%p177) target = $region28
    $region27: #{promptlm_forward.1} parent=5 // pred_region
      // Predicated region
      $region29: #{promptlm_forward.1} parent=27 // pred_check
        %p180 = pneg %p31
      $region30: #{promptlm_forward.1} parent=27 // pred_check_branch
        %182 = sbr.rel (%p180) target = $region32
      $region31: #{promptlm_forward.1} parent=27 // pred_region
        %p183 = scmp.lt.s32.totalorder %s11, 1
        %s184 = scalar_select %p183, %s11, 1
        %s185 = smul.addr %s184, 8
        %s186 = scalar_lea.vmem %s0, %s185
      $region32: #{promptlm_forward.1} parent=27 // pred_fallthru
        _
      // Predicated region
      $region33: #{promptlm_forward.1} parent=27 // pred_check
        %p187 = pneg %p57
      $region34: #{promptlm_forward.1} parent=27 // pred_check_branch
        %189 = sbr.rel (%p187) target = $region36
      $region35: #{promptlm_forward.1} parent=27 // pred_region
        %p190 = scmp.lt.s32.totalorder %s11, 1
        %s191 = scalar_select %p190, %s11, 1
        %s192 = smul.addr %s191, 8
        %s193 = scalar_lea.vmem %s1, %s192
      $region36: #{promptlm_forward.1} parent=27 // pred_fallthru
        _
    $region28: #{promptlm_forward.1} parent=5 // pred_fallthru
      _
    %p194 = scmp.le.s32.totalorder 1, %s11
    %p195 = scmp.lt.s32.totalorder %s11, 3
    %p196 = pnand %p194, %p195
    %p197 = pneg %p196
    // Predicated region
    $region37: #{promptlm_forward.1} parent=5 // pred_check
      _
    $region38: #{promptlm_forward.1} parent=5 // pred_check_branch
      %199 = sbr.rel (%p196) target = $region40
    $region39: #{promptlm_forward.1} parent=5 // pred_region
      %s200 = ssub.s32 %s11, 1
      %p201 = scmp.lt.s32.totalorder %s16, 1
      %s202 = scalar_select %p201, %s16, 1
      %s203 = smul.addr %s202, 8
      %s204 = scalar_lea.vmem %s0, %s203
      %p205 = pneg %p37
      %p206 = pneg %p34
      %p207 = scmp.lt.s32.totalorder %s16, 1
      %s208 = scalar_select %p207, %s16, 1
      %s209 = smul.addr %s208, 8
      %s210 = scalar_lea.vmem %s1, %s209
      %p211 = pneg %p63
      %p212 = pneg %p60
      %p213 = pneg %p84
      %p214 = pneg %p81
      %p215 = pneg %p105
      %p216 = pneg %p102
      %p217 = pneg %p126
      %p218 = pneg %p123
      %p219 = pneg %p152
      %p220 = pneg %p149
      %p221 = scmp.lt.s32.totalorder %s16, 1
      %s222 = scalar_select %p221, %s16, 1
      %s223 = smul.addr %s222, 8
      %s224 = scalar_lea.vmem %s5, %s223
      %p225 = scmp.lt.s32.totalorder %s16, 1
      %s226 = scalar_select %p225, %s16, 1
      %s227 = smul.addr %s226, 8
      %s228 = scalar_lea.vmem %s0, %s227
      %p229 = scmp.lt.s32.totalorder %s16, 1
      %s230 = scalar_select %p229, %s16, 1
      %s231 = smul.addr %s230, 8
      %s232 = scalar_lea.vmem %s1, %s231
      %p233 = scmp.lt.s32.totalorder %s16, 1
      %s234 = scalar_select %p233, %s16, 1
      %s235 = smul.addr %s234, 8
      %s236 = scalar_lea.vmem %s5, %s235
      %v238 = vld [vmem:[%s228] sm:$0xff]
      %v239 = vld [vmem:[%s232] sm:$0xff]
      %v240 = vlaneseq
      %v241 = vand.u32 %v240, 127
      %242 = vset.pattern.permute.xlu0 0
      %243 = vperm.xlu0 %242, %v238
      %v244 = vpop.permute.xlu0 %243
      %vm245 = vcmp.eq.s32.totalorder %v241, %v244
      %v246 = vsel %vm245, 1, 0
      %v247 = vcvt.s32.f32 %v246
      %v248 = vpack.c.bf16 %v247, %v247
      %v249 = vld [vmem:[%s2] sm:$0xf]
      %v250 = vld [vmem:[%s2 + $0x4] sm:$0xf]
      %v251 = vld [vmem:[%s2 + $0x8] sm:$0xf]
      %v252 = vld [vmem:[%s2 + $0xc] sm:$0xf]
      %v253 = vld [vmem:[%s2 + $0x10] sm:$0xf]
      %v254 = vld [vmem:[%s2 + $0x14] sm:$0xf]
      %v255 = vld [vmem:[%s2 + $0x18] sm:$0xf]
      %v256 = vld [vmem:[%s2 + $0x1c] sm:$0xf]
      %v257 = vld [vmem:[%s2 + $0x20] sm:$0xf]
      %v258 = vld [vmem:[%s2 + $0x24] sm:$0xf]
      %v259 = vld [vmem:[%s2 + $0x28] sm:$0xf]
      %v260 = vld [vmem:[%s2 + $0x2c] sm:$0xf]
      %v261 = vld [vmem:[%s2 + $0x30] sm:$0xf]
      %v262 = vld [vmem:[%s2 + $0x34] sm:$0xf]
      %v263 = vld [vmem:[%s2 + $0x38] sm:$0xf]
      %v264 = vld [vmem:[%s2 + $0x3c] sm:$0xf]
      %v281 = vunpack.c.l.b16 %v249
      %v282 = vunpack.c.l.b16 %v250
      %v283 = vunpack.c.l.b16 %v251
      %v284 = vunpack.c.l.b16 %v252
      %v285 = vunpack.c.l.b16 %v253
      %v286 = vunpack.c.l.b16 %v254
      %v287 = vunpack.c.l.b16 %v255
      %v288 = vunpack.c.l.b16 %v256
      %v289 = vunpack.c.l.b16 %v257
      %v290 = vunpack.c.l.b16 %v258
      %v291 = vunpack.c.l.b16 %v259
      %v292 = vunpack.c.l.b16 %v260
      %v293 = vunpack.c.l.b16 %v261
      %v294 = vunpack.c.l.b16 %v262
      %v295 = vunpack.c.l.b16 %v263
      %v296 = vunpack.c.l.b16 %v264
      %v297 = vpack.c.b16 %v282, %v281
      %v298 = vpack.c.b16 %v284, %v283
      %v299 = vpack.c.b16 %v286, %v285
      %v300 = vpack.c.b16 %v288, %v287
      %v301 = vpack.c.b16 %v290, %v289
      %v302 = vpack.c.b16 %v292, %v291
      %v303 = vpack.c.b16 %v294, %v293
      %v304 = vpack.c.b16 %v296, %v295
      %313 = vmatpush.bf16.msra.mxu0 %v304
      %314 = vmatpush.bf16.msra.mxu0 %v303
      %315 = vmatpush.bf16.msra.mxu0 %v302
      %316 = vmatpush.bf16.msra.mxu0 %v301
      %317 = vmatpush.bf16.msra.mxu0 %v300
      %318 = vmatpush.bf16.msra.mxu0 %v299
      %319 = vmatpush.bf16.msra.mxu0 %v298
      %320 = vmatpush.bf16.msra.mxu0 %v297
      %321 = vmatmul.bf16.gmra.mxu0 %v248
      %v322 = vpop.f32.mrf.mxu0
      %v323 = vadd.f32 0.0, %v322
      %v324 = vpop.f32.mrf.mxu0
      %325 = vdwg.mxu0
      %v326 = vtanh.pop %v323
      %v327 = vpack.c.bf16 %v326, %v326
      %v328 = vld [vmem:[%s3] sm:$0xf]
      %v329 = vld [vmem:[%s3 + $0x4] sm:$0xf]
      %v330 = vld [vmem:[%s3 + $0x8] sm:$0xf]
      %v331 = vld [vmem:[%s3 + $0xc] sm:$0xf]
      %v332 = vld [vmem:[%s4] sm:$0x1]
      %v334 = vperm.slane %v332, 0
      %v340 = vunpack.c.l.b16 %v328
      %v341 = vunpack.c.l.b16 %v329
      %v342 = vunpack.c.l.b16 %v330
      %v343 = vunpack.c.l.b16 %v331
      %v344 = vpack.c.b16 %v341, %v340
      %v345 = vpack.c.b16 %v343, %v342
      %vm348 = vcmask 261120
      %v350 = vsel %vm348, %v327, 0
      %352 = vmatpush.bf16.msra.mxu0 0
      %353 = vmatpush.bf16.msra.mxu0 0
      %354 = vmatpush.bf16.msra.mxu0 0
      %355 = vmatpush.bf16.msra.mxu0 0
      %356 = vmatpush.bf16.msra.mxu0 0
      %357 = vmatpush.bf16.msra.mxu0 0
      %358 = vmatpush.bf16.msra.mxu0 %v345
      %359 = vmatpush.bf16.msra.mxu0 %v344
      %360 = vmatmul.bf16.gmra.mxu0 %v350
      %v361 = vpop.f32.mrf.mxu0
      %v362 = vadd.f32 %v334, %v361
      %v363 = vpop.f32.mrf.mxu0
      %364 = vdwg.mxu0
      %v365 = vlaneseq
      %v366 = vshrl.u32 %v365, 7
      %vm367 = vcmp.gt.s32.totalorder %v239, 0
      %vm368 = vcmp.gt.s32.totalorder %v366, 0
      %vm369 = vmand %vm367, %vm368
      %v370 = vsel %vm369, 1.0, 0.0
      %372 = vset.pattern.permute.xlu0 0
      %373 = vperm.xlu0 %372, %v370
      %v374 = vpop.permute.xlu0 %373
      %v376 = vmul.f32 %v247, %v374
      %v377 = vpack.c.bf16 %v376, %v376
      %v378 = vadd.s32 %v366, 1
      %vm379 = vcmp.eq.s32.totalorder %v241, %v378
      %v380 = vsel %vm379, 1, 0
      %v381 = vcvt.s32.f32 %v380
      %v382 = vpack.c.bf16 %v381, %v381
      %vm383 = vcmask 64512
      %v385 = vsel %vm383, %v382, 0
      %vm387 = vcmask 1043456
      %v389 = vsel %vm387, %v377, 0
      %391 = vmatpush.bf16.msra.mxu0 0
      %392 = vmatpush.bf16.msra.mxu0 0
      %393 = vmatpush.bf16.msra.mxu0 0
      %394 = vmatpush.bf16.msra.mxu0 0
      %395 = vmatpush.bf16.msra.mxu0 0
      %396 = vmatpush.bf16.msra.mxu0 0
      %397 = vmatpush.bf16.msra.mxu0 0
      %398 = vmatpush.bf16.msra.mxu0 %v389
      %399 = vmatmul.bf16.gmra.mxu0 %v385
      %v400 = vpop.f32.mrf.mxu0
      %v401 = vadd.f32 0.0, %v400
      %v402 = vpop.f32.mrf.mxu0
      %403 = vdwg.mxu0
      %404 = vmax.xlane.f32.xlu0 %v362
      %v405 = vpop.xlane.xlu0 %404
      %v406 = vsub.f32 %v362, %v405
      %v407 = vmul.f32 %v406, 1.442695
      %v408 = vpow.pop %v407
      %409 = vadd.xlane.f32.xlu0 %v408
      %v410 = vpop.xlane.xlu0 %409
      %v411 = vlog2.pop %v410
      %v412 = vmul.f32 %v411, 0.6931472
      %v413 = vmul.f32 %v401, %v406
      %414 = vadd.xlane.f32.xlu0 %v413
      %v415 = vpop.xlane.xlu0 %414
      %416 = vadd.xlane.f32.xlu0 %v401
      %v417 = vpop.xlane.xlu0 %416
      %v418 = vmul.f32 %v417, %v412
      %v419 = vsub.f32 %v418, %v415
      %vm420 = vcmask 7168
      %v421 = vsel %vm420, %v419, 0.0
      %422 = vadd.xlane.f32.xlu0 %v421
      %v423 = vpop.xlane.xlu0 %422
      %v424 = vrot.slane %v423, 4
      %v425 = vadd.f32 %v423, %v424
      %v426 = vrot.slane %v425, 2
      %v427 = vadd.f32 %v425, %v426
      %v428 = vrot.slane %v427, 1
      %v429 = vadd.f32 %v427, %v428
      %s430 = vtos %v429
      %v431 = vsel %vm420, %v417, 0.0
      %432 = vadd.xlane.f32.xlu0 %v431
      %v433 = vpop.xlane.xlu0 %432
      %v434 = vrot.slane %v433, 4
      %v435 = vadd.f32 %v433, %v434
      %v436 = vrot.slane %v435, 2
      %v437 = vadd.f32 %v435, %v436
      %v438 = vrot.slane %v437, 1
      %v439 = vadd.f32 %v437, %v438
      %s440 = vtos %v439
      %vm441 = vcmp.eq.s32.totalorder %v366, 0
      %vm442 = vcmp.eq.s32.totalorder %v241, 0
      %vm443 = vmand %vm441, %vm442
      %vm444 = vcmp.eq.s32.totalorder %v241, 1
      %vm445 = vmand %vm441, %vm444
      %v446 = vstv %s440
      %v447 = vsel %vm445, %v446, 0.0
      %v448 = vstv %s430
      %v449 = vsel %vm443, %v448, %v447
      %450 = vst [vmem:[%s236] sm:$0xff] %v449
      %p451 = scmp.lt.s32.totalorder %s16, 1
      %s452 = scalar_select %p451, %s16, 1
      %s453 = smul.addr %s452, 8
      %s454 = scalar_lea.vmem %s5, %s453
      // Predicated region
      $region41: #{promptlm_forward.1} parent=39 // pred_check
        %p455 = pneg %p149
      $region42: #{promptlm_forward.1} parent=39 // pred_check_branch
        %457 = sbr.rel (%p455) target = $region44
      $region43: #{promptlm_forward.1} parent=39 // pred_region
        _
      $region44: #{promptlm_forward.1} parent=39 // pred_fallthru
        _
    $region40: #{promptlm_forward.1} parent=5 // pred_fallthru
      _
    %p458 = scmp.le.s32.totalorder 2, %s11
    // Predicated region
    $region45: #{promptlm_forward.1} parent=5 // pred_check
      %p459 = pneg %p458
    $region46: #{promptlm_forward.1} parent=5 // pred_check_branch
      %461 = sbr.rel (%p459) target = $region48
    $region47: #{promptlm_forward.1} parent=5 // pred_region
      %s462 = ssub.s32 %s11, 2
      // Predicated region
      $region49: #{promptlm_forward.1} parent=47 // pred_check
        %p463 = pneg %p155
      $region50: #{promptlm_forward.1} parent=47 // pred_check_branch
        %465 = sbr.rel (%p463) target = $region52
      $region51: #{promptlm_forward.1} parent=47 // pred_region
        %p466 = scmp.lt.s32.totalorder %s17, 1
        %s467 = scalar_select %p466, %s17, 1
        %s468 = smul.addr %s467, 8
        %s469 = scalar_lea.vmem %s5, %s468
      $region52: #{promptlm_forward.1} parent=47 // pred_fallthru
        _
    $region48: #{promptlm_forward.1} parent=5 // pred_fallthru
      _
  $region6: #{promptlm_forward.1} parent=0 // loop_footer
    %s15 = sadd.s32 1, %s11
  $region7: #{promptlm_forward.1} parent=0 // loop_footer_branch
    %10 = sbr.rel target = $region3
  $region8: #{promptlm_forward.1} parent=0 // loop_exit
    _

</llo_original>
